<compile_context>
chip_gen: v6e
topology: v6e:2x2x1
jax: 0.10.0
libtpu: 0.0.40
codegen_flags: <defaults>
</compile_context>

<pallas_src>
import functools

import jax
import jax.numpy as jnp
from jax import lax
from jax.experimental import pallas as pl
from jax.experimental.pallas import tpu as pltpu

ACC_ROWS = 8                        # f32 sublane count; per-stat partial tile is (8, LANES)
MAX_BLOCK_ELEMS = 1 << 20           # ~4 MiB of f32 per input per grid step
_VMEM_LIMIT_BYTES = 32 * 1024 * 1024


# ---------------------------------------------------------------------------
# Kernel
# ---------------------------------------------------------------------------

def _stats_kernel(x_ref, y_ref, out_ref, *, mode, nchunks, chunk_rows, lanes):
    """Partial statistics for one (block_rows, lanes) block.

    mode='mse'  -> out_ref[0, 0]        = per-slot partial sum of (x - y)^2
    mode='ssim' -> out_ref[0, 0..4]     = per-slot partial [sum x, sum y,
                                          sum xx, sum yy, sum xy]
    All partial tiles are (ACC_ROWS, lanes) f32; the caller sums them.
    """

    def fold(v):
        # (chunk_rows, lanes) f32 -> (ACC_ROWS, lanes) f32 via whole-vreg adds.
        if chunk_rows == ACC_ROWS:
            return v
        return v.reshape(chunk_rows // ACC_ROWS, ACC_ROWS, lanes).sum(axis=0)

    def load(ref, j):
        r = pl.multiple_of(j * chunk_rows, chunk_rows)
        return ref[pl.ds(r, chunk_rows), :].astype(jnp.float32)

    zero = jnp.zeros((ACC_ROWS, lanes), jnp.float32)

    if mode == "mse":
        def body(j, acc):
            d = load(x_ref, j) - load(y_ref, j)
            return acc + fold(d * d)

        out_ref[0, 0] = lax.fori_loop(0, nchunks, body, zero)
    else:  # 'ssim' raw moments
        def body(j, carry):
            sx, sy, sxx, syy, sxy = carry
            x = load(x_ref, j)
            y = load(y_ref, j)
            return (sx + fold(x), sy + fold(y), sxx + fold(x * x),
                    syy + fold(y * y), sxy + fold(x * y))

        sx, sy, sxx, syy, sxy = lax.fori_loop(0, nchunks, body, (zero,) * 5)
        out_ref[0, 0] = sx
        out_ref[0, 1] = sy
        out_ref[0, 2] = sxx
        out_ref[0, 3] = syy
        out_ref[0, 4] = sxy


# ---------------------------------------------------------------------------
# Pallas wrapper
# ---------------------------------------------------------------------------

def _block_partial_stats(x2d, y2d, *, mode, block_rows, nblocks, chunk_rows):
    """Run the streaming kernel over the first nblocks*block_rows rows."""
    rows, lanes = x2d.shape
    n_stats = 1 if mode == "mse" else 5
    n_cov = nblocks * block_rows * lanes
    flops_per_elem = 3 if mode == "mse" else 8
    out_bytes = nblocks * n_stats * ACC_ROWS * lanes * 4

    kernel = functools.partial(
        _stats_kernel, mode=mode, nchunks=block_rows // chunk_rows,
        chunk_rows=chunk_rows, lanes=lanes)

    partial_tiles = pl.pallas_call(
        kernel,
        out_shape=jax.ShapeDtypeStruct((nblocks, n_stats, ACC_ROWS, lanes),
                                       jnp.float32),
        grid=(nblocks,),
        in_specs=[
            pl.BlockSpec((block_rows, lanes), lambda i: (i, 0)),
            pl.BlockSpec((block_rows, lanes), lambda i: (i, 0)),
        ],
        out_specs=pl.BlockSpec((1, n_stats, ACC_ROWS, lanes),
                               lambda i: (i, 0, 0, 0)),
        compiler_params=pltpu.CompilerParams(
            dimension_semantics=("parallel",),   # pure map -> megacore-shardable
            vmem_limit_bytes=_VMEM_LIMIT_BYTES),
        cost_estimate=pl.CostEstimate(
            flops=flops_per_elem * n_cov,
            transcendentals=0,
            bytes_accessed=2 * n_cov * x2d.dtype.itemsize + out_bytes),
    )(x2d, y2d)

    return jnp.sum(partial_tiles, axis=(0, 2, 3))   # (n_stats,) f32


def _run_stats(pred, label, *, mode, max_block_elems=MAX_BLOCK_ELEMS):
    """mode='mse'  -> f32[1]: [sum((x-y)^2)]
       mode='ssim' -> f32[5]: [sum x, sum y, sum xx, sum yy, sum xy]

    The Pallas path only ever sees the full, free-reshaped (rows, LANES) slab
    (no prefix-slice copy); any remainder is handled by a small plain-JAX tail.
    """
    assert pred.shape == label.shape
    n_stats = 1 if mode == "mse" else 5
    x = pred.reshape(-1)
    y = label.reshape(-1)
    n = x.shape[0]

    lanes = next((c for c in (512, 256, 128) if n % c == 0), 0)
    if x.dtype.itemsize not in (2, 4):
        lanes = 0   # unsupported packing -> plain-JAX fallback

    stats = jnp.zeros((n_stats,), jnp.float32)
    n_cov = 0
    if lanes:
        rows = n // lanes
        chunk_rows = ACC_ROWS * max(1, 4 // x.dtype.itemsize)   # 8 f32 / 16 bf16
        if rows >= chunk_rows:
            max_block_rows = max(
                chunk_rows,
                (max_block_elems // lanes) // chunk_rows * chunk_rows)
            nb = pl.cdiv(rows, max_block_rows)
            block_rows = max(chunk_rows,
                             (rows // nb) // chunk_rows * chunk_rows)
            nblocks = rows // block_rows
            x2d = x.reshape(rows, lanes)    # free reshape of the full array
            y2d = y.reshape(rows, lanes)
            stats = stats + _block_partial_stats(
                x2d, y2d, mode=mode, block_rows=block_rows,
                nblocks=nblocks, chunk_rows=chunk_rows)
            n_cov = nblocks * block_rows * lanes

    if n_cov < n:
        # Bounded tail (< one block) or non-128-aligned fallback: plain JAX on a
        # suffix slice only — avoids the near-full-array prefix copy flagged in
        # the perf review.
        tx = x[n_cov:].astype(jnp.float32)
        ty = y[n_cov:].astype(jnp.float32)
        if mode == "mse":
            td = tx - ty
            tail = jnp.stack([jnp.sum(td * td)])
        else:
            tail = jnp.stack([jnp.sum(tx), jnp.sum(ty), jnp.sum(tx * tx),
                              jnp.sum(ty * ty), jnp.sum(tx * ty)])
        stats = stats + tail
    return stats


# ---------------------------------------------------------------------------
# Loss functions (time-domain)
# ---------------------------------------------------------------------------

@jax.jit
def mse_time_loss(pred, label):
    """torch.nn.MSELoss(reduction='mean')"""
    n = pred.size
    s = _run_stats(pred, label, mode="mse")
    return s[0] / jnp.float32(n)


@jax.jit
def ssim_time_loss(pred, label):
    """_ssim_loss(pred, label) — global single-window SSIM.

    torch.var() is unbiased (N-1); cov = mean(x*y) - mean_x*mean_y is biased.
    Note: var/cov are formed from raw f32 moments, which is fine for ~zero-mean
    audio but cancellation-prone for large DC offsets.
    """
    n = jnp.float32(pred.size)
    s = _run_stats(pred, label, mode="ssim")
    sum_x, sum_y, sum_xx, sum_yy, sum_xy = s[0], s[1], s[2], s[3], s[4]

    mean_x = sum_x / n
    mean_y = sum_y / n
    var_x = (sum_xx - n * mean_x * mean_x) / (n - 1.0)
    var_y = (sum_yy - n * mean_y * mean_y) / (n - 1.0)
    cov = sum_xy / n - mean_x * mean_y

    c1 = jnp.float32(0.01 ** 2)
    c2 = jnp.float32(0.03 ** 2)
    ssim = ((2.0 * mean_x * mean_y + c1) * (2.0 * cov + c2)
            / (mean_x * mean_x + mean_y * mean_y + c1)
            / (var_x + var_y + c2))
    return (1.0 - ssim) / 2.0


class Loss:
    """JAX/Pallas mirror of the PyTorch `Loss` module (no parameters)."""

    def __init__(self, loss_type, loss_kwargs):
        loss_dict = {
            "l2": lambda: mse_time_loss,
            "ssim_time": lambda: ssim_time_loss,
            # TODO(synk): 'l1_mel'/'l2_mel'/'ssim_mel'/'l1_fft'/'l2_fft' need a
            # torchaudio-style STFT / mel front-end; not implemented here.
        }
        if loss_type not in loss_dict:
            raise NotImplementedError(f"loss_type {loss_type!r} not supported")
        self.loss_fn = functools.partial(loss_dict[loss_type](), **loss_kwargs)

    def __call__(self, pred, label):
        return self.loss_fn(pred, label)

    forward = __call__   # alias to match torch naming


# ---------------------------------------------------------------------------
# Self-test
# ---------------------------------------------------------------------------

def _ref_losses(pred, label):
    p = pred.astype(jnp.float32)
    l = label.astype(jnp.float32)
    ref_mse = jnp.mean((p - l) ** 2)
    mx, my = jnp.mean(p), jnp.mean(l)
    vx, vy = jnp.var(p, ddof=1), jnp.var(l, ddof=1)
    cov = jnp.mean(p * l) - mx * my
    c1, c2 = 0.01 ** 2, 0.03 ** 2
    ref_ssim = (1 - (2 * mx * my + c1) * (2 * cov + c2)
                / (mx * mx + my * my + c1) / (vx + vy + c2)) / 2
    return ref_mse, ref_ssim


if __name__ == "__main__":
    key = jax.random.PRNGKey(0)
    ks = jax.random.split(key, 6)

    mse_mod = Loss("l2", {})
    ssim_mod = Loss("ssim_time", {})

    # Case 1: 512-lane aligned slab (batch=2, samples=4096), single block.
    pred = jax.random.normal(ks[0], (2, 4096), dtype=jnp.float32)
    label = pred + 0.1 * jax.random.normal(ks[1], (2, 4096), dtype=jnp.float32)
    mse_val = jax.block_until_ready(mse_mod(pred, label))
    ssim_val = jax.block_until_ready(ssim_mod(pred, label))
    ref_mse, ref_ssim = _ref_losses(pred, label)
    assert jnp.allclose(mse_val, ref_mse, rtol=1e-5, atol=1e-6), (mse_val, ref_mse)
    assert jnp.allclose(ssim_val, ref_ssim, rtol=1e-4, atol=1e-5), (ssim_val, ref_ssim)

    # Case 2: 128-lane aligned but not block-divisible -> kernel + JAX row tail.
    pred2 = jax.random.normal(ks[2], (5, 384), dtype=jnp.float32)      # n = 1920
    label2 = pred2 + 0.1 * jax.random.normal(ks[3], (5, 384), dtype=jnp.float32)
    mse2 = jax.block_until_ready(mse_mod(pred2, label2))
    ssim2 = jax.block_until_ready(ssim_mod(pred2, label2))
    ref_mse2, ref_ssim2 = _ref_losses(pred2, label2)
    assert jnp.allclose(mse2, ref_mse2, rtol=1e-5, atol=1e-6), (mse2, ref_mse2)
    assert jnp.allclose(ssim2, ref_ssim2, rtol=1e-4, atol=1e-5), (ssim2, ref_ssim2)

    # Case 3: truly unaligned element count -> pure-JAX fallback path.
    pred3 = jax.random.normal(ks[4], (3, 1000), dtype=jnp.float32)     # n = 3000
    label3 = pred3 + 0.1 * jax.random.normal(ks[5], (3, 1000), dtype=jnp.float32)
    mse3 = jax.block_until_ready(mse_mod(pred3, label3))
    ssim3 = jax.block_until_ready(ssim_mod(pred3, label3))
    ref_mse3, ref_ssim3 = _ref_losses(pred3, label3)
    assert jnp.allclose(mse3, ref_mse3, rtol=1e-5, atol=1e-6), (mse3, ref_mse3)
    assert jnp.allclose(ssim3, ref_ssim3, rtol=1e-4, atol=1e-5), (ssim3, ref_ssim3)

    # Case 4: multi-block grid (exercises the "parallel" block axis) via a
    # small block-size override; compare raw statistic sums.
    multi_stats = jax.jit(functools.partial(_run_stats, mode="ssim",
                                            max_block_elems=4096))
    s = jax.block_until_ready(multi_stats(pred, label))
    p32, l32 = pred.astype(jnp.float32), label.astype(jnp.float32)
    ref_s = jnp.stack([jnp.sum(p32), jnp.sum(l32), jnp.sum(p32 * p32),
                       jnp.sum(l32 * l32), jnp.sum(p32 * l32)])
    assert jnp.allclose(s, ref_s, rtol=1e-5, atol=5e-2), (s, ref_s)

    # Case 5: bf16 inputs (16-row sublane packing path).
    pred_b = pred.astype(jnp.bfloat16)
    label_b = label.astype(jnp.bfloat16)
    mse_b = jax.block_until_ready(mse_mod(pred_b, label_b))
    ssim_b = jax.block_until_ready(ssim_mod(pred_b, label_b))
    ref_mse_b, ref_ssim_b = _ref_losses(pred_b, label_b)
    assert jnp.allclose(mse_b, ref_mse_b, rtol=1e-4, atol=1e-5), (mse_b, ref_mse_b)
    assert jnp.allclose(ssim_b, ref_ssim_b, rtol=1e-3, atol=1e-4), (ssim_b, ref_ssim_b)

    print("KERNEL_OK")
</pallas_src>

<mosaic_0001>
module attributes {stable_mosaic.version = 11 : i64} {
  func.func @_stats_kernel(%arg0: i32, %arg1: memref<16x512xf32, #tpu.memory_space<vmem>>, %arg2: memref<16x512xf32, #tpu.memory_space<vmem>>, %arg3: memref<1x1x8x512xf32, #tpu.memory_space<vmem>>) attributes {dimension_semantics = [#tpu.dimension_semantics<parallel>], iteration_bounds = array<i64: 1>, scalar_prefetch = 0 : i64, scratch_operands = 0 : i64, tpu.core_type = #tpu.core_type<tc>, window_params = [{transform_indices = @transform_0, window_bounds = array<i64: 16, 512>}, {transform_indices = @transform_1, window_bounds = array<i64: 16, 512>}, {transform_indices = @transform_2, window_bounds = array<i64: 1, 1, 8, 512>}]} {
    %cst = arith.constant 0.000000e+00 : f32
    %0 = vector.broadcast %cst : f32 to vector<8x512xf32>
    %c0_i32 = arith.constant 0 : i32
    %c2_i32 = arith.constant 2 : i32
    %1 = arith.addi %c0_i32, %c2_i32 : i32
    %c1_i32 = arith.constant 1 : i32
    %2 = scf.for %arg4 = %c0_i32 to %1 step %c1_i32 iter_args(%arg5 = %0) -> (vector<8x512xf32>)  : i32 {
      %c8_i32 = arith.constant 8 : i32
      %6 = arith.muli %arg4, %c8_i32 : i32
      %7 = tpu.assume_multiple %6, 8 : i32
      %8 = arith.index_cast %7 : i32 to index
      %c0_4 = arith.constant 0 : index
      %9 = vector.load %arg1[%8, %c0_4] : memref<16x512xf32, #tpu.memory_space<vmem>>, vector<8x512xf32>
      %c8_i32_5 = arith.constant 8 : i32
      %10 = arith.muli %arg4, %c8_i32_5 : i32
      %11 = tpu.assume_multiple %10, 8 : i32
      %12 = arith.index_cast %11 : i32 to index
      %c0_6 = arith.constant 0 : index
      %13 = vector.load %arg2[%12, %c0_6] : memref<16x512xf32, #tpu.memory_space<vmem>>, vector<8x512xf32>
      %14 = arith.subf %9, %13 : vector<8x512xf32>
      %15 = arith.mulf %14, %14 : vector<8x512xf32>
      %16 = arith.addf %arg5, %15 : vector<8x512xf32>
      scf.yield %16 : vector<8x512xf32>
    }
    %c2_i32_0 = arith.constant 2 : i32
    %c0 = arith.constant 0 : index
    %c0_1 = arith.constant 0 : index
    %c0_2 = arith.constant 0 : index
    %c0_3 = arith.constant 0 : index
    %3 = vector.load %arg3[%c0, %c0_1, %c0_2, %c0_3] : memref<1x1x8x512xf32, #tpu.memory_space<vmem>>, vector<1x1x8x512xf32>
    %4 = vector.shape_cast %3 : vector<1x1x8x512xf32> to vector<8x512xf32>
    %5 = vector.shape_cast %2 : vector<8x512xf32> to vector<1x1x8x512xf32>
    tpu.vector_store %arg3[%c0, %c0_1, %c0_2, %c0_3], %5 {strides = array<i32>} : memref<1x1x8x512xf32, #tpu.memory_space<vmem>>, vector<1x1x8x512xf32>,
    return
  }
  func.func @transform_0(%arg0: i32) -> (i32, i32) {
    %c0_i32 = arith.constant 0 : i32
    %c0_i32_0 = arith.constant 0 : i32
    return %arg0, %c0_i32 : i32, i32
  }
  func.func @transform_1(%arg0: i32) -> (i32, i32) {
    %c0_i32 = arith.constant 0 : i32
    %c0_i32_0 = arith.constant 0 : i32
    return %arg0, %c0_i32 : i32, i32
  }
  func.func @transform_2(%arg0: i32) -> (i32, i32, i32, i32) {
    %c0_i32 = arith.constant 0 : i32
    %c0_i32_0 = arith.constant 0 : i32
    %c0_i32_1 = arith.constant 0 : i32
    %c0_i32_2 = arith.constant 0 : i32
    return %arg0, %c0_i32, %c0_i32_0, %c0_i32_1 : i32, i32, i32, i32
  }
}

</mosaic_0001>

<llo_original>
// kernel: mse_time_loss.1
$region0: #{mse_time_loss.1}
  #allocation0 [shape = 'u32[]', space=smem, size = 0x4, offset = 0x4, fixed_abs, tag = 'smem constant byte address 0x4 - core index']
  #allocation1 [shape = 'u32[144,128]{1,0:T(1,128)}', space=vmem, size = 0x12000, scoped, tag = 'internal scratch']
  %s0 = inlined_call_operand.vmem [shape: f32[16,512], index: 0, kind: input, shape index: {}]
  %s1 = inlined_call_operand.vmem [shape: f32[16,512], index: 1, kind: input, shape index: {}]
  %s2 = inlined_call_operand.vmem [shape: f32[1,1,8,512], index: 2, kind: output, shape index: {}]
  %s3 = sld [smem:[#allocation0]]
  $region25: #{mse_time_loss.1} parent=0
    _
  %s5 = ssub.s32 1, %s3
  %s6 = scalar_select 0, %s5, %s3
  // Predicated region
  $region2: #{mse_time_loss.1} parent=0 // pred_check
    _
  $region3: #{mse_time_loss.1} parent=0 // pred_check_branch
    %8 = sbr.rel (0) target = $region5
  $region4: #{mse_time_loss.1} parent=0 // pred_region
    _
  $region5: #{mse_time_loss.1} parent=0 // pred_fallthru
    _
  // Predicated region
  $region6: #{mse_time_loss.1} parent=0 // pred_check
    _
  $region7: #{mse_time_loss.1} parent=0 // pred_check_branch
    %10 = sbr.rel (0) target = $region9
  $region8: #{mse_time_loss.1} parent=0 // pred_region
    _
  $region9: #{mse_time_loss.1} parent=0 // pred_fallthru
    _
  loop: start=0, step=1, limit=2
  $region10: #{mse_time_loss.1} parent=0 // loop_pre_header
    _
  $region11: #{mse_time_loss.1} parent=0 // loop_header
    %s12 = sphi 0, %s16
    %p13 = scmp.ge.s32.totalorder %s12, 2
    %v17 = vphi 0.0, %v45
    %v18 = vphi 0.0, %v46
    %v19 = vphi 0.0, %v47
    %v20 = vphi 0.0, %v48
  $region12: #{mse_time_loss.1} parent=0 // loop_header_branch
    %15 = sbr.rel (%p13) target = $region16
  $region13: #{mse_time_loss.1} parent=0 // loop_body
    %s21 = smul.u32 %s12, 8
    %s22 = sshra.s32 %s21, 3
    %s23 = sand.u32 %s21, 7
    %s24 = smul.u32 %s22, 4
    %s25 = smul.addr %s24, 8
    %s26 = scalar_lea.vmem %s0, %s25
    %v27 = vld [vmem:[%s26] sm:$0xff]
    %v28 = vld [vmem:[%s26 + $0x8] sm:$0xff]
    %v29 = vld [vmem:[%s26 + $0x10] sm:$0xff]
    %v30 = vld [vmem:[%s26 + $0x18] sm:$0xff]
    %s31 = smul.addr %s24, 8
    %s32 = scalar_lea.vmem %s1, %s31
    %v33 = vld [vmem:[%s32] sm:$0xff]
    %v34 = vld [vmem:[%s32 + $0x8] sm:$0xff]
    %v35 = vld [vmem:[%s32 + $0x10] sm:$0xff]
    %v36 = vld [vmem:[%s32 + $0x18] sm:$0xff]
    %v37 = vsub.f32 %v27, %v33
    %v38 = vsub.f32 %v28, %v34
    %v39 = vsub.f32 %v29, %v35
    %v40 = vsub.f32 %v30, %v36
    %v41 = vmul.f32 %v37, %v37
    %v42 = vmul.f32 %v38, %v38
    %v43 = vmul.f32 %v39, %v39
    %v44 = vmul.f32 %v40, %v40
    %v45 = vadd.f32 %v17, %v41
    %v46 = vadd.f32 %v18, %v42
    %v47 = vadd.f32 %v19, %v43
    %v48 = vadd.f32 %v20, %v44
  $region14: #{mse_time_loss.1} parent=0 // loop_footer
    %s16 = sadd.s32 1, %s12
  $region15: #{mse_time_loss.1} parent=0 // loop_footer_branch
    %11 = sbr.rel target = $region11
  $region16: #{mse_time_loss.1} parent=0 // loop_exit
    _
  %49 = vst [vmem:[%s2] sm:$0xff] %v17
  %50 = vst [vmem:[%s2 + $0x8] sm:$0xff] %v18
  %51 = vst [vmem:[%s2 + $0x10] sm:$0xff] %v19
  %52 = vst [vmem:[%s2 + $0x18] sm:$0xff] %v20
  // Predicated region
  $region17: #{mse_time_loss.1} parent=0 // pred_check
    _
  $region18: #{mse_time_loss.1} parent=0 // pred_check_branch
    %54 = sbr.rel (0) target = $region20
  $region19: #{mse_time_loss.1} parent=0 // pred_region
    _
  $region20: #{mse_time_loss.1} parent=0 // pred_fallthru
    _
  // Predicated region
  $region21: #{mse_time_loss.1} parent=0 // pred_check
    _
  $region22: #{mse_time_loss.1} parent=0 // pred_check_branch
    %56 = sbr.rel (0) target = $region24
  $region23: #{mse_time_loss.1} parent=0 // pred_region
    _
  $region24: #{mse_time_loss.1} parent=0 // pred_fallthru
    _

</llo_original>
